<compile_context>
chip_gen: v6e
topology: v6e:2x2x1
jax: 0.10.0
libtpu: 0.0.40
codegen_flags: <defaults>
</compile_context>

<pallas_src>
import math
import numpy as np
import jax
import jax.numpy as jnp
from jax.experimental import pallas as pl
from jax.experimental.pallas import tpu as pltpu

# ---- problem sizes (small, consistent with the module) ----------------------
B = 2            # batch (after x_set.view(-1, C, H, W))
C = 4            # in_channels
IMG = 16         # image_size
HW = IMG * IMG   # pixels per sample (lane axis inside the kernel)
N = B * HW
HID = 32         # hidden width of the synthetic eps-predictor
T_MAX = 1000     # diffusion timesteps (linear beta schedule)


def _silu(v):
    return v * (1.0 / (1.0 + jnp.exp(-v)))


# ----------------------------- Pallas kernel ---------------------------------
def ddpm_kernel(coeff_ref,            # VMEM (2C, 1): rows 0:C sqrt(acp[t]), rows C:2C sqrt(1-acp[t])
                xn_ref,               # VMEM (2C, HW): rows 0:C x_start, rows C:2C noise
                temb_ref,             # VMEM (HID, 1): time-emb MLP output + b1
                w1t_ref, w2t_ref, b2_ref, w3t_ref, b3_ref,
                loss_ref):            # VMEM (1, 1) per-sample block
    xn = xn_ref[...]                              # (2C, HW)  [x0 ; noise]

    # ---- q_sample:  x_t = sqrt(acp[t]) * x0 + sqrt(1 - acp[t]) * noise ----
    scaled = coeff_ref[...] * xn                  # lane-broadcast multiply (VPU)
    x_t = scaled[:C, :] + scaled[C:, :]           # (C, HW)
    noise = xn[C:, :]                             # (C, HW)

    # ---- eps-prediction network (1x1 convs == pixelwise matmuls, W^T @ x) ----
    h = jnp.dot(w1t_ref[...], x_t, preferred_element_type=jnp.float32)      # (HID, HW)
    h = _silu(h + temb_ref[...])                                            # + (temb+b1) col
    h = _silu(jnp.dot(w2t_ref[...], h,
                      preferred_element_type=jnp.float32) + b2_ref[...])    # (HID, HW)
    eps = jnp.dot(w3t_ref[...], h,
                  preferred_element_type=jnp.float32) + b3_ref[...]         # (C, HW)

    # ---- per-sample MSE loss: mean over C*H*W (XLU cross-lane/sublane sums) ----
    se = (noise - eps) ** 2
    row = jnp.sum(se, axis=1, keepdims=True)       # (C, 1)
    tot = jnp.sum(row, axis=0, keepdims=True)      # (1, 1)
    loss_ref[...] = tot * (1.0 / float(HW * C))


# --------------------------------- glue --------------------------------------
def timestep_embedding(t, dim):
    """Sinusoidal timestep embedding (as in improved-diffusion)."""
    half = dim // 2
    freqs = jnp.exp(-math.log(10000.0) * jnp.arange(half, dtype=jnp.float32) / half)
    args = t.astype(jnp.float32)[:, None] * freqs[None, :]
    return jnp.concatenate([jnp.cos(args), jnp.sin(args)], axis=-1)       # (B, dim)


def make_params():
    """Deterministic synthetic eps-predictor parameters."""
    ks = jax.random.split(jax.random.PRNGKey(42), 5)

    def w(key, fan_in, shape):
        return jax.random.normal(key, shape, jnp.float32) / math.sqrt(fan_in)

    return dict(
        wt1=w(ks[0], HID, (HID, HID)), bt1=jnp.zeros((1, HID), jnp.float32),
        wt2=w(ks[1], HID, (HID, HID)), bt2=jnp.zeros((1, HID), jnp.float32),
        w1=w(ks[2], C,   (C, HID)),    b1=jnp.zeros((1, HID), jnp.float32),
        w2=w(ks[3], HID, (HID, HID)),  b2=jnp.zeros((1, HID), jnp.float32),
        w3=w(ks[4], HID, (HID, C)),    b3=jnp.zeros((1, C),   jnp.float32),
    )


def diffusion_schedule():
    """Linear beta schedule (scale = 1000 / T = 1)."""
    betas = np.linspace(1e-4, 0.02, T_MAX, dtype=np.float64)
    acp = np.cumprod(1.0 - betas)
    return (jnp.asarray(np.sqrt(acp), jnp.float32),
            jnp.asarray(np.sqrt(1.0 - acp), jnp.float32))


def ddpm_forward(x_set, t, noise, params):
    """Mirrors DDPM.forward: returns {'loss': [B]} for the eps-prediction MSE."""
    # x_set.view(-1, C, H, W) -> per-sample (C, HW): channels on sublanes,
    # pixels on lanes. Stack [x0 ; noise] on the channel axis -> (2C, HW) = (8, 256):
    # a single fully-dense tile group per sample, one DMA stream.
    x3 = x_set.reshape(-1, C, IMG, IMG).astype(jnp.float32).reshape(B, C, HW)
    n3 = noise.astype(jnp.float32).reshape(B, C, HW)
    xn = jnp.concatenate([x3, n3], axis=1)                                # (B, 2C, HW)

    sqrt_acp, sqrt_1m_acp = diffusion_schedule()
    ca = sqrt_acp[t]                                                      # (B,)
    cb = sqrt_1m_acp[t]                                                   # (B,)
    coeff = jnp.concatenate(
        [jnp.broadcast_to(ca[:, None], (B, C)),
         jnp.broadcast_to(cb[:, None], (B, C))], axis=1)[:, :, None]      # (B, 2C, 1)

    # ---- timestep-embedding MLP hoisted off the per-pixel path (2x32 rows) ----
    semb = timestep_embedding(t, HID)                                     # (B, HID)
    temb = _silu(semb @ params["wt1"] + params["bt1"]) @ params["wt2"] + params["bt2"]
    temb_col = (temb + params["b1"])[:, :, None]                          # (B, HID, 1), b1 folded

    # transposed weights for W^T @ x layout
    w1t = params["w1"].T                      # (HID, C)
    w2t = params["w2"].T                      # (HID, HID)
    w3t = params["w3"].T                      # (C, HID)
    b2c = params["b2"].reshape(HID, 1)
    b3c = params["b3"].reshape(C, 1)

    grid_spec = pltpu.PrefetchScalarGridSpec(
        num_scalar_prefetch=0,
        grid=(B,),
        in_specs=[
            pl.BlockSpec((None, 2 * C, 1), lambda b: (b, 0, 0)),      # coeff    (B, 2C, 1)
            pl.BlockSpec((None, 2 * C, HW), lambda b: (b, 0, 0)),     # [x;eps]  (B, 2C, HW)
            pl.BlockSpec((None, HID, 1), lambda b: (b, 0, 0)),        # temb+b1  (B, HID, 1)
            pl.BlockSpec((HID, C), lambda b: (0, 0)),                 # w1t
            pl.BlockSpec((HID, HID), lambda b: (0, 0)),               # w2t
            pl.BlockSpec((HID, 1), lambda b: (0, 0)),                 # b2 col
            pl.BlockSpec((C, HID), lambda b: (0, 0)),                 # w3t
            pl.BlockSpec((C, 1), lambda b: (0, 0)),                   # b3 col
        ],
        out_specs=pl.BlockSpec((None, 1, 1), lambda b: (b, 0, 0)),    # loss (B, 1, 1)
    )

    loss = pl.pallas_call(
        ddpm_kernel,
        out_shape=jax.ShapeDtypeStruct((B, 1, 1), jnp.float32),
        grid_spec=grid_spec,
        compiler_params=pltpu.CompilerParams(
            dimension_semantics=("parallel",)),   # one sample per TC on v7x
    )(coeff, xn, temb_col, w1t, w2t, b2c, w3t, b3c)
    return {"loss": loss.reshape(B)}


def ddpm_forward_ref(x_set, t, noise, params):
    """Pure-JAX reference for sanity checking (original pixel-row layout)."""
    x = x_set.reshape(-1, C, IMG, IMG).astype(jnp.float32)
    x2 = jnp.transpose(x, (0, 2, 3, 1)).reshape(N, C)
    n2 = jnp.transpose(noise.astype(jnp.float32), (0, 2, 3, 1)).reshape(N, C)
    sqrt_acp, sqrt_1m_acp = diffusion_schedule()
    ca = jnp.repeat(sqrt_acp[t].reshape(B, 1), HW, axis=0)
    cb = jnp.repeat(sqrt_1m_acp[t].reshape(B, 1), HW, axis=0)
    x_t = ca * x2 + cb * n2
    temb = _silu(timestep_embedding(t, HID) @ params["wt1"] + params["bt1"])
    temb = temb @ params["wt2"] + params["bt2"]
    temb_full = jnp.repeat(temb, HW, axis=0)
    h = _silu(x_t @ params["w1"] + params["b1"] + temb_full)
    h = _silu(h @ params["w2"] + params["b2"])
    eps = h @ params["w3"] + params["b3"]
    se = ((n2 - eps) ** 2).reshape(B, HW * C)
    return {"loss": jnp.mean(se, axis=-1)}


if __name__ == "__main__":
    key = jax.random.PRNGKey(0)
    kx, kn = jax.random.split(key)
    x_set = jax.random.normal(kx, (B, C, IMG, IMG), jnp.float32)   # NCHW input set
    t = jnp.array([10, 500], dtype=jnp.int32)                      # diffusion timesteps
    noise = jax.random.normal(kn, (B, C, IMG, IMG), jnp.float32)   # fixed eps for determinism

    params = make_params()

    out = ddpm_forward(x_set, t, noise, params)
    loss = jax.block_until_ready(out["loss"])

    ref = ddpm_forward_ref(x_set, t, noise, params)["loss"]
    assert loss.shape == (B,)
    assert bool(jnp.all(jnp.isfinite(loss)))
    np.testing.assert_allclose(np.asarray(loss), np.asarray(ref), rtol=5e-2, atol=1e-4)

    print("KERNEL_OK")
</pallas_src>

<mosaic_0001>
module attributes {stable_mosaic.version = 11 : i64} {
  func.func @ddpm_kernel(%arg0: i32, %arg1: memref<1x8x1xf32, #tpu.memory_space<vmem>>, %arg2: memref<1x8x256xf32, #tpu.memory_space<vmem>>, %arg3: memref<1x32x1xf32, #tpu.memory_space<vmem>>, %arg4: memref<32x4xf32, #tpu.memory_space<vmem>>, %arg5: memref<32x32xf32, #tpu.memory_space<vmem>>, %arg6: memref<32x1xf32, #tpu.memory_space<vmem>>, %arg7: memref<4x32xf32, #tpu.memory_space<vmem>>, %arg8: memref<4x1xf32, #tpu.memory_space<vmem>>, %arg9: memref<1x1x1xf32, #tpu.memory_space<vmem>>) attributes {dimension_semantics = [#tpu.dimension_semantics<parallel>], iteration_bounds = array<i64: 2>, scalar_prefetch = 0 : i64, scratch_operands = 0 : i64, tpu.core_type = #tpu.core_type<tc>, window_params = [{transform_indices = @transform_0, window_bounds = array<i64: 1, 8, 1>}, {transform_indices = @transform_1, window_bounds = array<i64: 1, 8, 256>}, {transform_indices = @transform_2, window_bounds = array<i64: 1, 32, 1>}, {pipeline_mode = #tpu.pipeline_mode<synchronous>, transform_indices = @transform_3, window_bounds = array<i64: 32, 4>}, {pipeline_mode = #tpu.pipeline_mode<synchronous>, transform_indices = @transform_4, window_bounds = array<i64: 32, 32>}, {pipeline_mode = #tpu.pipeline_mode<synchronous>, transform_indices = @transform_5, window_bounds = array<i64: 32, 1>}, {pipeline_mode = #tpu.pipeline_mode<synchronous>, transform_indices = @transform_6, window_bounds = array<i64: 4, 32>}, {pipeline_mode = #tpu.pipeline_mode<synchronous>, transform_indices = @transform_7, window_bounds = array<i64: 4, 1>}, {transform_indices = @transform_8, window_bounds = array<i64: 1, 1, 1>}]} {
    %c0 = arith.constant 0 : index
    %c0_0 = arith.constant 0 : index
    %c0_1 = arith.constant 0 : index
    %0 = vector.load %arg2[%c0, %c0_0, %c0_1] : memref<1x8x256xf32, #tpu.memory_space<vmem>>, vector<1x8x256xf32>
    %1 = vector.shape_cast %0 : vector<1x8x256xf32> to vector<8x256xf32>
    %c0_2 = arith.constant 0 : index
    %c0_3 = arith.constant 0 : index
    %c0_4 = arith.constant 0 : index
    %2 = vector.load %arg1[%c0_2, %c0_3, %c0_4] : memref<1x8x1xf32, #tpu.memory_space<vmem>>, vector<1x8x1xf32>
    %3 = vector.shape_cast %2 : vector<1x8x1xf32> to vector<8x1xf32>
    %4 = vector.broadcast %3 : vector<8x1xf32> to vector<8x256xf32>
    %5 = arith.mulf %4, %1 : vector<8x256xf32>
    %6 = vector.extract_strided_slice %5 {offsets = [0, 0], sizes = [4, 256], strides = [1, 1]} : vector<8x256xf32> to vector<4x256xf32>
    %7 = vector.extract_strided_slice %5 {offsets = [4, 0], sizes = [4, 256], strides = [1, 1]} : vector<8x256xf32> to vector<4x256xf32>
    %8 = arith.addf %6, %7 : vector<4x256xf32>
    %9 = vector.extract_strided_slice %1 {offsets = [4, 0], sizes = [4, 256], strides = [1, 1]} : vector<8x256xf32> to vector<4x256xf32>
    %c0_5 = arith.constant 0 : index
    %c0_6 = arith.constant 0 : index
    %10 = vector.load %arg4[%c0_5, %c0_6] : memref<32x4xf32, #tpu.memory_space<vmem>>, vector<32x4xf32>
    %cst = arith.constant dense<0.000000e+00> : vector<32x256xf32>
    %11 = tpu.matmul %10, %8, %cst {dimension_numbers = #tpu.dot_dimension_numbers<[1], [0], [0], [1], [0, 0, 1, 1], [], []>} : vector<32x4xf32>, vector<4x256xf32>, vector<32x256xf32> -> vector<32x256xf32>
    %c0_7 = arith.constant 0 : index
    %c0_8 = arith.constant 0 : index
    %c0_9 = arith.constant 0 : index
    %12 = vector.load %arg3[%c0_7, %c0_8, %c0_9] : memref<1x32x1xf32, #tpu.memory_space<vmem>>, vector<1x32x1xf32>
    %13 = vector.shape_cast %12 : vector<1x32x1xf32> to vector<32x1xf32>
    %14 = vector.broadcast %13 : vector<32x1xf32> to vector<32x256xf32>
    %15 = arith.addf %11, %14 : vector<32x256xf32>
    %cst_10 = arith.constant 0.000000e+00 : f32
    %16 = vector.broadcast %cst_10 : f32 to vector<32x256xf32>
    %17 = arith.subf %16, %15 : vector<32x256xf32>
    %18 = math.exp %17 : vector<32x256xf32>
    %cst_11 = arith.constant 1.000000e+00 : f32
    %19 = vector.broadcast %cst_11 : f32 to vector<32x256xf32>
    %20 = arith.addf %19, %18 : vector<32x256xf32>
    %cst_12 = arith.constant 1.000000e+00 : f32
    %21 = vector.broadcast %cst_12 : f32 to vector<32x256xf32>
    %22 = arith.divf %21, %20 : vector<32x256xf32>
    %23 = arith.mulf %15, %22 : vector<32x256xf32>
    %c0_13 = arith.constant 0 : index
    %c0_14 = arith.constant 0 : index
    %24 = vector.load %arg5[%c0_13, %c0_14] : memref<32x32xf32, #tpu.memory_space<vmem>>, vector<32x32xf32>
    %cst_15 = arith.constant dense<0.000000e+00> : vector<32x256xf32>
    %25 = tpu.matmul %24, %23, %cst_15 {dimension_numbers = #tpu.dot_dimension_numbers<[1], [0], [0], [1], [0, 0, 1, 1], [], []>} : vector<32x32xf32>, vector<32x256xf32>, vector<32x256xf32> -> vector<32x256xf32>
    %c0_16 = arith.constant 0 : index
    %c0_17 = arith.constant 0 : index
    %26 = vector.load %arg6[%c0_16, %c0_17] : memref<32x1xf32, #tpu.memory_space<vmem>>, vector<32x1xf32>
    %27 = vector.broadcast %26 : vector<32x1xf32> to vector<32x256xf32>
    %28 = arith.addf %25, %27 : vector<32x256xf32>
    %cst_18 = arith.constant 0.000000e+00 : f32
    %29 = vector.broadcast %cst_18 : f32 to vector<32x256xf32>
    %30 = arith.subf %29, %28 : vector<32x256xf32>
    %31 = math.exp %30 : vector<32x256xf32>
    %cst_19 = arith.constant 1.000000e+00 : f32
    %32 = vector.broadcast %cst_19 : f32 to vector<32x256xf32>
    %33 = arith.addf %32, %31 : vector<32x256xf32>
    %cst_20 = arith.constant 1.000000e+00 : f32
    %34 = vector.broadcast %cst_20 : f32 to vector<32x256xf32>
    %35 = arith.divf %34, %33 : vector<32x256xf32>
    %36 = arith.mulf %28, %35 : vector<32x256xf32>
    %c0_21 = arith.constant 0 : index
    %c0_22 = arith.constant 0 : index
    %37 = vector.load %arg7[%c0_21, %c0_22] : memref<4x32xf32, #tpu.memory_space<vmem>>, vector<4x32xf32>
    %cst_23 = arith.constant dense<0.000000e+00> : vector<4x256xf32>
    %38 = tpu.matmul %37, %36, %cst_23 {dimension_numbers = #tpu.dot_dimension_numbers<[1], [0], [0], [1], [0, 0, 1, 1], [], []>} : vector<4x32xf32>, vector<32x256xf32>, vector<4x256xf32> -> vector<4x256xf32>
    %c0_24 = arith.constant 0 : index
    %c0_25 = arith.constant 0 : index
    %39 = vector.load %arg8[%c0_24, %c0_25] : memref<4x1xf32, #tpu.memory_space<vmem>>, vector<4x1xf32>
    %40 = vector.broadcast %39 : vector<4x1xf32> to vector<4x256xf32>
    %41 = arith.addf %38, %40 : vector<4x256xf32>
    %42 = arith.subf %9, %41 : vector<4x256xf32>
    %43 = arith.mulf %42, %42 : vector<4x256xf32>
    %cst_26 = arith.constant dense<0.000000e+00> : vector<4xf32>
    %44 = vector.multi_reduction <add>, %43, %cst_26 [1] : vector<4x256xf32> to vector<4xf32>
    %45 = vector.shape_cast %44 : vector<4xf32> to vector<4x1xf32>
    %cst_27 = arith.constant dense<0.000000e+00> : vector<1xf32>
    %46 = vector.multi_reduction <add>, %45, %cst_27 [0] : vector<4x1xf32> to vector<1xf32>
    %47 = vector.shape_cast %46 : vector<1xf32> to vector<1x1xf32>
    %cst_28 = arith.constant 9.765625E-4 : f32
    %48 = vector.broadcast %cst_28 : f32 to vector<1x1xf32>
    %49 = arith.mulf %47, %48 : vector<1x1xf32>
    %c0_29 = arith.constant 0 : index
    %c0_30 = arith.constant 0 : index
    %c0_31 = arith.constant 0 : index
    %50 = vector.load %arg9[%c0_29, %c0_30, %c0_31] : memref<1x1x1xf32, #tpu.memory_space<vmem>>, vector<1x1x1xf32>
    %51 = vector.shape_cast %50 : vector<1x1x1xf32> to vector<1x1xf32>
    %52 = vector.shape_cast %49 : vector<1x1xf32> to vector<1x1x1xf32>
    tpu.vector_store %arg9[%c0_29, %c0_30, %c0_31], %52 {strides = array<i32>} : memref<1x1x1xf32, #tpu.memory_space<vmem>>, vector<1x1x1xf32>,
    return
  }
  func.func @transform_0(%arg0: i32) -> (i32, i32, i32) {
    %c0_i32 = arith.constant 0 : i32
    %c0_i32_0 = arith.constant 0 : i32
    %c0_i32_1 = arith.constant 0 : i32
    return %arg0, %c0_i32, %c0_i32_0 : i32, i32, i32
  }
  func.func @transform_1(%arg0: i32) -> (i32, i32, i32) {
    %c0_i32 = arith.constant 0 : i32
    %c0_i32_0 = arith.constant 0 : i32
    %c0_i32_1 = arith.constant 0 : i32
    return %arg0, %c0_i32, %c0_i32_0 : i32, i32, i32
  }
  func.func @transform_2(%arg0: i32) -> (i32, i32, i32) {
    %c0_i32 = arith.constant 0 : i32
    %c0_i32_0 = arith.constant 0 : i32
    %c0_i32_1 = arith.constant 0 : i32
    return %arg0, %c0_i32, %c0_i32_0 : i32, i32, i32
  }
  func.func @transform_3(%arg0: i32) -> (i32, i32) {
    %c0_i32 = arith.constant 0 : i32
    %c0_i32_0 = arith.constant 0 : i32
    %c0_i32_1 = arith.constant 0 : i32
    return %c0_i32, %c0_i32_0 : i32, i32
  }
  func.func @transform_4(%arg0: i32) -> (i32, i32) {
    %c0_i32 = arith.constant 0 : i32
    %c0_i32_0 = arith.constant 0 : i32
    %c0_i32_1 = arith.constant 0 : i32
    return %c0_i32, %c0_i32_0 : i32, i32
  }
  func.func @transform_5(%arg0: i32) -> (i32, i32) {
    %c0_i32 = arith.constant 0 : i32
    %c0_i32_0 = arith.constant 0 : i32
    %c0_i32_1 = arith.constant 0 : i32
    return %c0_i32, %c0_i32_0 : i32, i32
  }
  func.func @transform_6(%arg0: i32) -> (i32, i32) {
    %c0_i32 = arith.constant 0 : i32
    %c0_i32_0 = arith.constant 0 : i32
    %c0_i32_1 = arith.constant 0 : i32
    return %c0_i32, %c0_i32_0 : i32, i32
  }
  func.func @transform_7(%arg0: i32) -> (i32, i32) {
    %c0_i32 = arith.constant 0 : i32
    %c0_i32_0 = arith.constant 0 : i32
    %c0_i32_1 = arith.constant 0 : i32
    return %c0_i32, %c0_i32_0 : i32, i32
  }
  func.func @transform_8(%arg0: i32) -> (i32, i32, i32) {
    %c0_i32 = arith.constant 0 : i32
    %c0_i32_0 = arith.constant 0 : i32
    %c0_i32_1 = arith.constant 0 : i32
    return %arg0, %c0_i32, %c0_i32_0 : i32, i32, i32
  }
}

</mosaic_0001>

<llo_original>
// kernel: tpu_custom_call.1
$region0: #{tpu_custom_call.1}
  #allocation0 [shape = 'u32[]', space=smem, size = 0x4, offset = 0x4, fixed_abs, tag = 'smem constant byte address 0x4 - core index']
  #allocation1 [shape = 'u32[144,128]{1,0:T(1,128)}', space=vmem, size = 0x12000, scoped, tag = 'internal scratch']
  %s0 = inlined_call_operand.vmem [shape: f32[2,8,1], index: 0, kind: input, shape index: {}]
  %s1 = inlined_call_operand.vmem [shape: f32[2,8,256], index: 1, kind: input, shape index: {}]
  %s2 = inlined_call_operand.vmem [shape: f32[2,32,1], index: 2, kind: input, shape index: {}]
  %s3 = inlined_call_operand.vmem [shape: f32[32,4], index: 3, kind: input, shape index: {}]
  %s4 = inlined_call_operand.vmem [shape: f32[32,32], index: 4, kind: input, shape index: {}]
  %s5 = inlined_call_operand.vmem [shape: f32[32,1], index: 5, kind: input, shape index: {}]
  %s6 = inlined_call_operand.vmem [shape: f32[4,32], index: 6, kind: input, shape index: {}]
  %s7 = inlined_call_operand.vmem [shape: f32[4,1], index: 7, kind: input, shape index: {}]
  %s8 = inlined_call_operand.vmem [shape: f32[2,1,1], index: 8, kind: output, shape index: {}]
  %s9 = sld [smem:[#allocation0]]
  $region65: #{tpu_custom_call.1} parent=0
    _
  %s11 = ssub.s32 1, %s9
  %s12 = scalar_select 0, %s11, %s9
  loop: start=0, step=1, limit=4
  $region2: #{tpu_custom_call.1} parent=0 // loop_pre_header
    _
  $region3: #{tpu_custom_call.1} parent=0 // loop_header
    %s14 = sphi 0, %s18
    %p15 = scmp.ge.s32.totalorder %s14, 4
    %s24 = sphi 0, %s26
    %s27 = sphi 0, %s24
    %s28 = sphi 0, %s27
    %s44 = sphi 0, %s28
    %s50 = sphi 0, %s52
    %s53 = sphi 0, %s50
    %s54 = sphi 0, %s53
    %s70 = sphi 0, %s54
    %s76 = sphi 0, %s78
    %s79 = sphi 0, %s76
    %s80 = sphi 0, %s79
    %s96 = sphi 0, %s80
    %s100 = sphi 0, %s100
    %s102 = sphi 0, %s100
    %s103 = sphi 0, %s102
    %s117 = sphi 0, %s103
    %s121 = sphi 0, %s121
    %s123 = sphi 0, %s121
    %s124 = sphi 0, %s123
    %s138 = sphi 0, %s124
    %s142 = sphi 0, %s142
    %s144 = sphi 0, %s142
    %s145 = sphi 0, %s144
    %s159 = sphi 0, %s145
    %s163 = sphi 0, %s163
    %s165 = sphi 0, %s163
    %s166 = sphi 0, %s165
    %s180 = sphi 0, %s166
    %s184 = sphi 0, %s184
    %s186 = sphi 0, %s184
    %s187 = sphi 0, %s186
    %s201 = sphi 0, %s187
    %s207 = sphi 0, %s209
    %s210 = sphi 0, %s207
    %s211 = sphi 0, %s210
    %s227 = sphi 0, %s211
  $region4: #{tpu_custom_call.1} parent=0 // loop_header_branch
    %17 = sbr.rel (%p15) target = $region8
  $region5: #{tpu_custom_call.1} parent=0 // loop_body
    %s19 = ssub.s32 %s14, 1
    %s20 = ssub.s32 %s14, 2
    %s21 = sadd.s32 %s14, 1
    %s22 = ssub.s32 %s14, %s21
    %p23 = scmp.eq.s32.totalorder %s22, 0
    %s25 = sadd.s32 %s24, 1
    %s26 = scalar_select %p23, %s24, %s25
    %p29 = pneg %p23
    %p30 = scmp.eq.s32.totalorder %s14, 1
    %p31 = por %p29, %p30
    %p32 = scmp.ne.s32.totalorder %s24, %s27
    %p33 = scmp.eq.s32.totalorder %s14, 0
    %p34 = por %p32, %p33
    %p35 = scmp.ne.s32.totalorder %s24, %s27
    %p36 = scmp.eq.s32.totalorder %s19, 1
    %p37 = por %p35, %p36
    %p38 = scmp.ne.s32.totalorder %s27, %s28
    %p39 = scmp.eq.s32.totalorder %s19, 0
    %p40 = por %p38, %p39
    %p41 = scmp.ne.s32.totalorder %s27, %s28
    %p42 = scmp.eq.s32.totalorder %s20, 1
    %p43 = por %p41, %p42
    %p45 = scmp.ne.s32.totalorder %s28, %s44
    %p46 = scmp.eq.s32.totalorder %s20, 0
    %p47 = por %p45, %p46
    %s48 = ssub.s32 %s14, %s21
    %p49 = scmp.eq.s32.totalorder %s48, 0
    %s51 = sadd.s32 %s50, 1
    %s52 = scalar_select %p49, %s50, %s51
    %p55 = pneg %p49
    %p56 = scmp.eq.s32.totalorder %s14, 1
    %p57 = por %p55, %p56
    %p58 = scmp.ne.s32.totalorder %s50, %s53
    %p59 = scmp.eq.s32.totalorder %s14, 0
    %p60 = por %p58, %p59
    %p61 = scmp.ne.s32.totalorder %s50, %s53
    %p62 = scmp.eq.s32.totalorder %s19, 1
    %p63 = por %p61, %p62
    %p64 = scmp.ne.s32.totalorder %s53, %s54
    %p65 = scmp.eq.s32.totalorder %s19, 0
    %p66 = por %p64, %p65
    %p67 = scmp.ne.s32.totalorder %s53, %s54
    %p68 = scmp.eq.s32.totalorder %s20, 1
    %p69 = por %p67, %p68
    %p71 = scmp.ne.s32.totalorder %s54, %s70
    %p72 = scmp.eq.s32.totalorder %s20, 0
    %p73 = por %p71, %p72
    %s74 = ssub.s32 %s14, %s21
    %p75 = scmp.eq.s32.totalorder %s74, 0
    %s77 = sadd.s32 %s76, 1
    %s78 = scalar_select %p75, %s76, %s77
    %p81 = pneg %p75
    %p82 = scmp.eq.s32.totalorder %s14, 1
    %p83 = por %p81, %p82
    %p84 = scmp.ne.s32.totalorder %s76, %s79
    %p85 = scmp.eq.s32.totalorder %s14, 0
    %p86 = por %p84, %p85
    %p87 = scmp.ne.s32.totalorder %s76, %s79
    %p88 = scmp.eq.s32.totalorder %s19, 1
    %p89 = por %p87, %p88
    %p90 = scmp.ne.s32.totalorder %s79, %s80
    %p91 = scmp.eq.s32.totalorder %s19, 0
    %p92 = por %p90, %p91
    %p93 = scmp.ne.s32.totalorder %s79, %s80
    %p94 = scmp.eq.s32.totalorder %s20, 1
    %p95 = por %p93, %p94
    %p97 = scmp.ne.s32.totalorder %s80, %s96
    %p98 = scmp.eq.s32.totalorder %s20, 0
    %p99 = por %p97, %p98
    %s101 = sadd.s32 %s100, 1
    %p104 = scmp.eq.s32.totalorder %s14, 1
    %p105 = scmp.ne.s32.totalorder %s100, %s102
    %p106 = scmp.eq.s32.totalorder %s14, 0
    %p107 = por %p105, %p106
    %p108 = scmp.ne.s32.totalorder %s100, %s102
    %p109 = scmp.eq.s32.totalorder %s19, 1
    %p110 = por %p108, %p109
    %p111 = scmp.ne.s32.totalorder %s102, %s103
    %p112 = scmp.eq.s32.totalorder %s19, 0
    %p113 = por %p111, %p112
    %p114 = scmp.ne.s32.totalorder %s102, %s103
    %p115 = scmp.eq.s32.totalorder %s20, 1
    %p116 = por %p114, %p115
    %p118 = scmp.ne.s32.totalorder %s103, %s117
    %p119 = scmp.eq.s32.totalorder %s20, 0
    %p120 = por %p118, %p119
    %s122 = sadd.s32 %s121, 1
    %p125 = scmp.eq.s32.totalorder %s14, 1
    %p126 = scmp.ne.s32.totalorder %s121, %s123
    %p127 = scmp.eq.s32.totalorder %s14, 0
    %p128 = por %p126, %p127
    %p129 = scmp.ne.s32.totalorder %s121, %s123
    %p130 = scmp.eq.s32.totalorder %s19, 1
    %p131 = por %p129, %p130
    %p132 = scmp.ne.s32.totalorder %s123, %s124
    %p133 = scmp.eq.s32.totalorder %s19, 0
    %p134 = por %p132, %p133
    %p135 = scmp.ne.s32.totalorder %s123, %s124
    %p136 = scmp.eq.s32.totalorder %s20, 1
    %p137 = por %p135, %p136
    %p139 = scmp.ne.s32.totalorder %s124, %s138
    %p140 = scmp.eq.s32.totalorder %s20, 0
    %p141 = por %p139, %p140
    %s143 = sadd.s32 %s142, 1
    %p146 = scmp.eq.s32.totalorder %s14, 1
    %p147 = scmp.ne.s32.totalorder %s142, %s144
    %p148 = scmp.eq.s32.totalorder %s14, 0
    %p149 = por %p147, %p148
    %p150 = scmp.ne.s32.totalorder %s142, %s144
    %p151 = scmp.eq.s32.totalorder %s19, 1
    %p152 = por %p150, %p151
    %p153 = scmp.ne.s32.totalorder %s144, %s145
    %p154 = scmp.eq.s32.totalorder %s19, 0
    %p155 = por %p153, %p154
    %p156 = scmp.ne.s32.totalorder %s144, %s145
    %p157 = scmp.eq.s32.totalorder %s20, 1
    %p158 = por %p156, %p157
    %p160 = scmp.ne.s32.totalorder %s145, %s159
    %p161 = scmp.eq.s32.totalorder %s20, 0
    %p162 = por %p160, %p161
    %s164 = sadd.s32 %s163, 1
    %p167 = scmp.eq.s32.totalorder %s14, 1
    %p168 = scmp.ne.s32.totalorder %s163, %s165
    %p169 = scmp.eq.s32.totalorder %s14, 0
    %p170 = por %p168, %p169
    %p171 = scmp.ne.s32.totalorder %s163, %s165
    %p172 = scmp.eq.s32.totalorder %s19, 1
    %p173 = por %p171, %p172
    %p174 = scmp.ne.s32.totalorder %s165, %s166
    %p175 = scmp.eq.s32.totalorder %s19, 0
    %p176 = por %p174, %p175
    %p177 = scmp.ne.s32.totalorder %s165, %s166
    %p178 = scmp.eq.s32.totalorder %s20, 1
    %p179 = por %p177, %p178
    %p181 = scmp.ne.s32.totalorder %s166, %s180
    %p182 = scmp.eq.s32.totalorder %s20, 0
    %p183 = por %p181, %p182
    %s185 = sadd.s32 %s184, 1
    %p188 = scmp.eq.s32.totalorder %s14, 1
    %p189 = scmp.ne.s32.totalorder %s184, %s186
    %p190 = scmp.eq.s32.totalorder %s14, 0
    %p191 = por %p189, %p190
    %p192 = scmp.ne.s32.totalorder %s184, %s186
    %p193 = scmp.eq.s32.totalorder %s19, 1
    %p194 = por %p192, %p193
    %p195 = scmp.ne.s32.totalorder %s186, %s187
    %p196 = scmp.eq.s32.totalorder %s19, 0
    %p197 = por %p195, %p196
    %p198 = scmp.ne.s32.totalorder %s186, %s187
    %p199 = scmp.eq.s32.totalorder %s20, 1
    %p200 = por %p198, %p199
    %p202 = scmp.ne.s32.totalorder %s187, %s201
    %p203 = scmp.eq.s32.totalorder %s20, 0
    %p204 = por %p202, %p203
    %s205 = ssub.s32 %s14, %s21
    %p206 = scmp.eq.s32.totalorder %s205, 0
    %s208 = sadd.s32 %s207, 1
    %s209 = scalar_select %p206, %s207, %s208
    %p212 = pneg %p206
    %p213 = scmp.eq.s32.totalorder %s14, 1
    %p214 = por %p212, %p213
    %p215 = scmp.ne.s32.totalorder %s207, %s210
    %p216 = scmp.eq.s32.totalorder %s14, 0
    %p217 = por %p215, %p216
    %p218 = scmp.ne.s32.totalorder %s207, %s210
    %p219 = scmp.eq.s32.totalorder %s19, 1
    %p220 = por %p218, %p219
    %p221 = scmp.ne.s32.totalorder %s210, %s211
    %p222 = scmp.eq.s32.totalorder %s19, 0
    %p223 = por %p221, %p222
    %p224 = scmp.ne.s32.totalorder %s210, %s211
    %p225 = scmp.eq.s32.totalorder %s20, 1
    %p226 = por %p224, %p225
    %p228 = scmp.ne.s32.totalorder %s211, %s227
    %p229 = scmp.eq.s32.totalorder %s20, 0
    %p230 = por %p228, %p229
    %p231 = scmp.le.s32.totalorder 1, %s14
    %p232 = scmp.lt.s32.totalorder %s14, 3
    %p233 = pnand %p231, %p232
    %p234 = pneg %p233
    // Predicated region
    $region9: #{tpu_custom_call.1} parent=5 // pred_check
      _
    $region10: #{tpu_custom_call.1} parent=5 // pred_check_branch
      %236 = sbr.rel (%p233) target = $region12
    $region11: #{tpu_custom_call.1} parent=5 // pred_region
      %s237 = ssub.s32 %s14, 1
      // Predicated region
      $region13: #{tpu_custom_call.1} parent=11 // pred_check
        %p238 = pneg %p113
      $region14: #{tpu_custom_call.1} parent=11 // pred_check_branch
        %240 = sbr.rel (%p238) target = $region16
      $region15: #{tpu_custom_call.1} parent=11 // pred_region
        _
      $region16: #{tpu_custom_call.1} parent=11 // pred_fallthru
        _
      // Predicated region
      $region17: #{tpu_custom_call.1} parent=11 // pred_check
        %p241 = pneg %p134
      $region18: #{tpu_custom_call.1} parent=11 // pred_check_branch
        %243 = sbr.rel (%p241) target = $region20
      $region19: #{tpu_custom_call.1} parent=11 // pred_region
        _
      $region20: #{tpu_custom_call.1} parent=11 // pred_fallthru
        _
      // Predicated region
      $region21: #{tpu_custom_call.1} parent=11 // pred_check
        %p244 = pneg %p155
      $region22: #{tpu_custom_call.1} parent=11 // pred_check_branch
        %246 = sbr.rel (%p244) target = $region24
      $region23: #{tpu_custom_call.1} parent=11 // pred_region
        _
      $region24: #{tpu_custom_call.1} parent=11 // pred_fallthru
        _
      // Predicated region
      $region25: #{tpu_custom_call.1} parent=11 // pred_check
        %p247 = pneg %p176
      $region26: #{tpu_custom_call.1} parent=11 // pred_check_branch
        %249 = sbr.rel (%p247) target = $region28
      $region27: #{tpu_custom_call.1} parent=11 // pred_region
        _
      $region28: #{tpu_custom_call.1} parent=11 // pred_fallthru
        _
      // Predicated region
      $region29: #{tpu_custom_call.1} parent=11 // pred_check
        %p250 = pneg %p197
      $region30: #{tpu_custom_call.1} parent=11 // pred_check_branch
        %252 = sbr.rel (%p250) target = $region32
      $region31: #{tpu_custom_call.1} parent=11 // pred_region
        _
      $region32: #{tpu_custom_call.1} parent=11 // pred_fallthru
        _
    $region12: #{tpu_custom_call.1} parent=5 // pred_fallthru
      _
    %p253 = scmp.lt.s32.totalorder %s14, 2
    // Predicated region
    $region33: #{tpu_custom_call.1} parent=5 // pred_check
      %p254 = pneg %p253
    $region34: #{tpu_custom_call.1} parent=5 // pred_check_branch
      %256 = sbr.rel (%p254) target = $region36
    $region35: #{tpu_custom_call.1} parent=5 // pred_region
      // Predicated region
      $region37: #{tpu_custom_call.1} parent=35 // pred_check
        %p257 = pneg %p34
      $region38: #{tpu_custom_call.1} parent=35 // pred_check_branch
        %259 = sbr.rel (%p257) target = $region40
      $region39: #{tpu_custom_call.1} parent=35 // pred_region
        %p260 = scmp.lt.s32.totalorder %s14, 1
        %s261 = scalar_select %p260, %s14, 1
        %s262 = smul.addr %s261, 8
        %s263 = scalar_lea.vmem %s0, %s262
      $region40: #{tpu_custom_call.1} parent=35 // pred_fallthru
        _
      // Predicated region
      $region41: #{tpu_custom_call.1} parent=35 // pred_check
        %p264 = pneg %p60
      $region42: #{tpu_custom_call.1} parent=35 // pred_check_branch
        %266 = sbr.rel (%p264) target = $region44
      $region43: #{tpu_custom_call.1} parent=35 // pred_region
        %p267 = scmp.lt.s32.totalorder %s14, 1
        %s268 = scalar_select %p267, %s14, 1
        %s269 = smul.addr %s268, 2
        %s270 = smul.addr %s269, 8
        %s271 = scalar_lea.vmem %s1, %s270
      $region44: #{tpu_custom_call.1} parent=35 // pred_fallthru
        _
      // Predicated region
      $region45: #{tpu_custom_call.1} parent=35 // pred_check
        %p272 = pneg %p86
      $region46: #{tpu_custom_call.1} parent=35 // pred_check_branch
        %274 = sbr.rel (%p272) target = $region48
      $region47: #{tpu_custom_call.1} parent=35 // pred_region
        %p275 = scmp.lt.s32.totalorder %s14, 1
        %s276 = scalar_select %p275, %s14, 1
        %s277 = smul.addr %s276, 4
        %s278 = smul.addr %s277, 8
        %s279 = scalar_lea.vmem %s2, %s278
      $region48: #{tpu_custom_call.1} parent=35 // pred_fallthru
        _
    $region36: #{tpu_custom_call.1} parent=5 // pred_fallthru
      _
    %p280 = scmp.le.s32.totalorder 1, %s14
    %p281 = scmp.lt.s32.totalorder %s14, 3
    %p282 = pnand %p280, %p281
    %p283 = pneg %p282
    // Predicated region
    $region49: #{tpu_custom_call.1} parent=5 // pred_check
      _
    $region50: #{tpu_custom_call.1} parent=5 // pred_check_branch
      %285 = sbr.rel (%p282) target = $region52
    $region51: #{tpu_custom_call.1} parent=5 // pred_region
      %s286 = ssub.s32 %s14, 1
      %p287 = scmp.lt.s32.totalorder %s19, 1
      %s288 = scalar_select %p287, %s19, 1
      %s289 = smul.addr %s288, 8
      %s290 = scalar_lea.vmem %s0, %s289
      %p291 = pneg %p40
      %p292 = pneg %p37
      %p293 = scmp.lt.s32.totalorder %s19, 1
      %s294 = scalar_select %p293, %s19, 1
      %s295 = smul.addr %s294, 2
      %s296 = smul.addr %s295, 8
      %s297 = scalar_lea.vmem %s1, %s296
      %p298 = pneg %p66
      %p299 = pneg %p63
      %p300 = scmp.lt.s32.totalorder %s19, 1
      %s301 = scalar_select %p300, %s19, 1
      %s302 = smul.addr %s301, 4
      %s303 = smul.addr %s302, 8
      %s304 = scalar_lea.vmem %s2, %s303
      %p305 = pneg %p92
      %p306 = pneg %p89
      %p307 = pneg %p113
      %p308 = pneg %p110
      %p309 = pneg %p134
      %p310 = pneg %p131
      %p311 = pneg %p155
      %p312 = pneg %p152
      %p313 = pneg %p176
      %p314 = pneg %p173
      %p315 = pneg %p197
      %p316 = pneg %p194
      %p317 = pneg %p223
      %p318 = pneg %p220
      %p319 = scmp.lt.s32.totalorder %s19, 1
      %s320 = scalar_select %p319, %s19, 1
      %s321 = scalar_lea.vmem %s8, %s320
      %p322 = scmp.lt.s32.totalorder %s19, 1
      %s323 = scalar_select %p322, %s19, 1
      %s324 = smul.addr %s323, 8
      %s325 = scalar_lea.vmem %s0, %s324
      %p326 = scmp.lt.s32.totalorder %s19, 1
      %s327 = scalar_select %p326, %s19, 1
      %s328 = smul.addr %s327, 2
      %s329 = smul.addr %s328, 8
      %s330 = scalar_lea.vmem %s1, %s329
      %p331 = scmp.lt.s32.totalorder %s19, 1
      %s332 = scalar_select %p331, %s19, 1
      %s333 = smul.addr %s332, 4
      %s334 = smul.addr %s333, 8
      %s335 = scalar_lea.vmem %s2, %s334
      %p336 = scmp.lt.s32.totalorder %s19, 1
      %s337 = scalar_select %p336, %s19, 1
      %s338 = scalar_lea.vmem %s8, %s337
      %v339 = vld [vmem:[%s330] sm:$0xff]
      %v340 = vld [vmem:[%s330 + $0x8] sm:$0xff]
      %v341 = vld [vmem:[%s325] sm:$0xff]
      %343 = vset.pattern.permute.xlu0 0
      %344 = vperm.xlu0 %343, %v341
      %v345 = vpop.permute.xlu0 %344
      %v347 = vmul.f32 %v345, %v339
      %v348 = vmul.f32 %v345, %v340
      %v351 = vrot.slane %v347, 4
      %v352 = vrot.slane %v348, 4
      %v355 = vadd.f32 %v347, %v351
      %v356 = vadd.f32 %v348, %v352
      %v357 = vld [vmem:[%s3] sm:$0xff]
      %v358 = vld [vmem:[%s3 + $0x8] sm:$0xff]
      %v359 = vld [vmem:[%s3 + $0x10] sm:$0xff]
      %v360 = vld [vmem:[%s3 + $0x18] sm:$0xff]
      %v361 = vld [vmem:[%s335] sm:$0xff]
      %v362 = vld [vmem:[%s335 + $0x8] sm:$0xff]
      %v363 = vld [vmem:[%s335 + $0x10] sm:$0xff]
      %v364 = vld [vmem:[%s335 + $0x18] sm:$0xff]
      %366 = vset.pattern.permute.xlu0 0
      %367 = vperm.xlu0 %366, %v361
      %v368 = vpop.permute.xlu0 %367
      %371 = vset.pattern.permute.xlu0 0
      %372 = vperm.xlu0 %371, %v362
      %v373 = vpop.permute.xlu0 %372
      %376 = vset.pattern.permute.xlu0 0
      %377 = vperm.xlu0 %376, %v363
      %v378 = vpop.permute.xlu0 %377
      %381 = vset.pattern.permute.xlu0 0
      %382 = vperm.xlu0 %381, %v364
      %v383 = vpop.permute.xlu0 %382
      %vm385 = vcmask 31744
      %v387 = vsel %vm385, %v357, 0
      %v390 = vsel %vm385, %v358, 0
      %v393 = vsel %vm385, %v359, 0
      %v396 = vsel %vm385, %v360, 0
      %vm398 = vcmask 1043456
      %v400 = vsel %vm398, %v355, 0
      %v403 = vsel %vm398, %v356, 0
      %405 = vmatprep.subr.mxu0 0.0
      %406 = vmatpush1.msra.mxu0 0.0
      %407 = vmatprep.subr.mxu0 0.0
      %408 = vmatpush1.msra.mxu0 0.0
      %409 = vmatprep.subr.mxu0 0.0
      %410 = vmatpush1.msra.mxu0 0.0
      %411 = vmatprep.subr.mxu0 0.0
      %412 = vmatpush1.msra.mxu0 0.0
      %413 = vmatprep.subr.mxu0 0.0
      %414 = vmatpush1.msra.mxu0 0.0
      %415 = vmatprep.subr.mxu0 0.0
      %416 = vmatpush1.msra.mxu0 0.0
      %417 = vmatprep.subr.mxu0 0.0
      %418 = vmatpush1.msra.mxu0 0.0
      %419 = vmatprep.subr.mxu0 0.0
      %420 = vmatpush1.msra.mxu0 0.0
      %421 = vmatprep.subr.mxu0 0.0
      %422 = vmatpush1.msra.mxu0 0.0
      %423 = vmatprep.subr.mxu0 0.0
      %424 = vmatpush1.msra.mxu0 0.0
      %425 = vmatprep.subr.mxu0 0.0
      %426 = vmatpush1.msra.mxu0 0.0
      %427 = vmatprep.subr.mxu0 0.0
      %428 = vmatpush1.msra.mxu0 0.0
      %429 = vmatprep.subr.mxu0 0.0
      %430 = vmatpush1.msra.mxu0 0.0
      %431 = vmatprep.subr.mxu0 0.0
      %432 = vmatpush1.msra.mxu0 0.0
      %433 = vmatprep.subr.mxu0 0.0
      %434 = vmatpush1.msra.mxu0 0.0
      %435 = vmatprep.subr.mxu0 %v403
      %436 = vmatpush1.msra.mxu0 %v400
      %437 = vmatprep.subr.mxu0 0.0
      %438 = vmatpush2.msra.mxu0 0.0
      %439 = vmatprep.subr.mxu0 0.0
      %440 = vmatpush2.msra.mxu0 0.0
      %441 = vmatprep.subr.mxu0 0.0
      %442 = vmatpush2.msra.mxu0 0.0
      %443 = vmatprep.subr.mxu0 0.0
      %444 = vmatpush2.msra.mxu0 0.0
      %445 = vmatprep.subr.mxu0 0.0
      %446 = vmatpush2.msra.mxu0 0.0
      %447 = vmatprep.subr.mxu0 0.0
      %448 = vmatpush2.msra.mxu0 0.0
      %449 = vmatprep.subr.mxu0 0.0
      %450 = vmatpush2.msra.mxu0 0.0
      %451 = vmatprep.subr.mxu0 0.0
      %452 = vmatpush2.msra.mxu0 0.0
      %453 = vmatprep.subr.mxu0 0.0
      %454 = vmatpush2.msra.mxu0 0.0
      %455 = vmatprep.subr.mxu0 0.0
      %456 = vmatpush2.msra.mxu0 0.0
      %457 = vmatprep.subr.mxu0 0.0
      %458 = vmatpush2.msra.mxu0 0.0
      %459 = vmatprep.subr.mxu0 0.0
      %460 = vmatpush2.msra.mxu0 0.0
      %461 = vmatprep.subr.mxu0 0.0
      %462 = vmatpush2.msra.mxu0 0.0
      %463 = vmatprep.subr.mxu0 0.0
      %464 = vmatpush2.msra.mxu0 0.0
      %465 = vmatprep.subr.mxu0 0.0
      %466 = vmatpush2.msra.mxu0 0.0
      %467 = vmatprep.subr.mxu0 0.0
      %468 = vmatpush2.msra.mxu0 0.0
      %469 = vmatprep.mubr.f32.mxu0 0.0
      %470 = vmatmul.mubr.f32.gmra.mxu0 %v387
      %v471 = vpop.f32.mrf.mxu0
      %v472 = vadd.f32 %v368, %v471
      %v473 = vpop.f32.mrf.mxu0
      %v474 = vadd.f32 %v368, %v473
      %475 = vmatprep.mubr.f32.mxu0 0.0
      %476 = vmatmul.mubr.f32.gmra.mxu0 %v390
      %v477 = vpop.f32.mrf.mxu0
      %v478 = vadd.f32 %v373, %v477
      %v479 = vpop.f32.mrf.mxu0
      %v480 = vadd.f32 %v373, %v479
      %481 = vmatprep.mubr.f32.mxu0 0.0
      %482 = vmatmul.mubr.f32.gmra.mxu0 %v393
      %v483 = vpop.f32.mrf.mxu0
      %v484 = vadd.f32 %v378, %v483
      %v485 = vpop.f32.mrf.mxu0
      %v486 = vadd.f32 %v378, %v485
      %487 = vmatprep.mubr.f32.mxu0 0.0
      %488 = vmatmul.mubr.f32.gmra.mxu0 %v396
      %v489 = vpop.f32.mrf.mxu0
      %v490 = vadd.f32 %v383, %v489
      %v491 = vpop.f32.mrf.mxu0
      %v492 = vadd.f32 %v383, %v491
      %493 = vdwg.mxu0
      %v494 = vsub.f32 0.0, %v472
      %v495 = vsub.f32 0.0, %v474
      %v496 = vsub.f32 0.0, %v478
      %v497 = vsub.f32 0.0, %v480
      %v498 = vsub.f32 0.0, %v484
      %v499 = vsub.f32 0.0, %v486
      %v500 = vsub.f32 0.0, %v490
      %v501 = vsub.f32 0.0, %v492
      %v502 = vmul.f32 %v494, 1.442695
      %v503 = vpow.pop %v502
      %v504 = vmul.f32 %v495, 1.442695
      %v505 = vpow.pop %v504
      %v506 = vmul.f32 %v496, 1.442695
      %v507 = vpow.pop %v506
      %v508 = vmul.f32 %v497, 1.442695
      %v509 = vpow.pop %v508
      %v510 = vmul.f32 %v498, 1.442695
      %v511 = vpow.pop %v510
      %v512 = vmul.f32 %v499, 1.442695
      %v513 = vpow.pop %v512
      %v514 = vmul.f32 %v500, 1.442695
      %v515 = vpow.pop %v514
      %v516 = vmul.f32 %v501, 1.442695
      %v517 = vpow.pop %v516
      %v518 = vadd.f32 %v503, 1.0
      %v519 = vadd.f32 %v505, 1.0
      %v520 = vadd.f32 %v507, 1.0
      %v521 = vadd.f32 %v509, 1.0
      %v522 = vadd.f32 %v511, 1.0
      %v523 = vadd.f32 %v513, 1.0
      %v524 = vadd.f32 %v515, 1.0
      %v525 = vadd.f32 %v517, 1.0
      %v526 = vrcp.pop %v518
      %v527 = vmul.f32 1.0, %v526
      %v528 = vrcp.pop %v519
      %v529 = vmul.f32 1.0, %v528
      %v530 = vrcp.pop %v520
      %v531 = vmul.f32 1.0, %v530
      %v532 = vrcp.pop %v521
      %v533 = vmul.f32 1.0, %v532
      %v534 = vrcp.pop %v522
      %v535 = vmul.f32 1.0, %v534
      %v536 = vrcp.pop %v523
      %v537 = vmul.f32 1.0, %v536
      %v538 = vrcp.pop %v524
      %v539 = vmul.f32 1.0, %v538
      %v540 = vrcp.pop %v525
      %v541 = vmul.f32 1.0, %v540
      %v542 = vmul.f32 %v472, %v527
      %v543 = vmul.f32 %v474, %v529
      %v544 = vmul.f32 %v478, %v531
      %v545 = vmul.f32 %v480, %v533
      %v546 = vmul.f32 %v484, %v535
      %v547 = vmul.f32 %v486, %v537
      %v548 = vmul.f32 %v490, %v539
      %v549 = vmul.f32 %v492, %v541
      %v550 = vld [vmem:[%s4] sm:$0xff]
      %v551 = vld [vmem:[%s4 + $0x8] sm:$0xff]
      %v552 = vld [vmem:[%s4 + $0x10] sm:$0xff]
      %v553 = vld [vmem:[%s4 + $0x18] sm:$0xff]
      %v554 = vld [vmem:[%s5] sm:$0xff]
      %v555 = vld [vmem:[%s5 + $0x8] sm:$0xff]
      %v556 = vld [vmem:[%s5 + $0x10] sm:$0xff]
      %v557 = vld [vmem:[%s5 + $0x18] sm:$0xff]
      %559 = vset.pattern.permute.xlu0 0
      %560 = vperm.xlu0 %559, %v554
      %v561 = vpop.permute.xlu0 %560
      %564 = vset.pattern.permute.xlu0 0
      %565 = vperm.xlu0 %564, %v555
      %v566 = vpop.permute.xlu0 %565
      %569 = vset.pattern.permute.xlu0 0
      %570 = vperm.xlu0 %569, %v556
      %v571 = vpop.permute.xlu0 %570
      %574 = vset.pattern.permute.xlu0 0
      %575 = vperm.xlu0 %574, %v557
      %v576 = vpop.permute.xlu0 %575
      %vm578 = vcmask 261120
      %v580 = vsel %vm578, %v550, 0
      %v583 = vsel %vm578, %v551, 0
      %v586 = vsel %vm578, %v552, 0
      %v589 = vsel %vm578, %v553, 0
      %591 = vmatprep.subr.mxu0 0.0
      %592 = vmatpush1.msra.mxu0 0.0
      %593 = vmatprep.subr.mxu0 0.0
      %594 = vmatpush1.msra.mxu0 0.0
      %595 = vmatprep.subr.mxu0 0.0
      %596 = vmatpush1.msra.mxu0 0.0
      %597 = vmatprep.subr.mxu0 0.0
      %598 = vmatpush1.msra.mxu0 0.0
      %599 = vmatprep.subr.mxu0 0.0
      %600 = vmatpush1.msra.mxu0 0.0
      %601 = vmatprep.subr.mxu0 0.0
      %602 = vmatpush1.msra.mxu0 0.0
      %603 = vmatprep.subr.mxu0 0.0
      %604 = vmatpush1.msra.mxu0 0.0
      %605 = vmatprep.subr.mxu0 0.0
      %606 = vmatpush1.msra.mxu0 0.0
      %607 = vmatprep.subr.mxu0 0.0
      %608 = vmatpush1.msra.mxu0 0.0
      %609 = vmatprep.subr.mxu0 0.0
      %610 = vmatpush1.msra.mxu0 0.0
      %611 = vmatprep.subr.mxu0 0.0
      %612 = vmatpush1.msra.mxu0 0.0
      %613 = vmatprep.subr.mxu0 0.0
      %614 = vmatpush1.msra.mxu0 0.0
      %615 = vmatprep.subr.mxu0 %v549
      %616 = vmatpush1.msra.mxu0 %v548
      %617 = vmatprep.subr.mxu0 %v547
      %618 = vmatpush1.msra.mxu0 %v546
      %619 = vmatprep.subr.mxu0 %v545
      %620 = vmatpush1.msra.mxu0 %v544
      %621 = vmatprep.subr.mxu0 %v543
      %622 = vmatpush1.msra.mxu0 %v542
      %623 = vmatprep.subr.mxu0 0.0
      %624 = vmatpush2.msra.mxu0 0.0
      %625 = vmatprep.subr.mxu0 0.0
      %626 = vmatpush2.msra.mxu0 0.0
      %627 = vmatprep.subr.mxu0 0.0
      %628 = vmatpush2.msra.mxu0 0.0
      %629 = vmatprep.subr.mxu0 0.0
      %630 = vmatpush2.msra.mxu0 0.0
      %631 = vmatprep.subr.mxu0 0.0
      %632 = vmatpush2.msra.mxu0 0.0
      %633 = vmatprep.subr.mxu0 0.0
      %634 = vmatpush2.msra.mxu0 0.0
      %635 = vmatprep.subr.mxu0 0.0
      %636 = vmatpush2.msra.mxu0 0.0
      %637 = vmatprep.subr.mxu0 0.0
      %638 = vmatpush2.msra.mxu0 0.0
      %639 = vmatprep.subr.mxu0 0.0
      %640 = vmatpush2.msra.mxu0 0.0
      %641 = vmatprep.subr.mxu0 0.0
      %642 = vmatpush2.msra.mxu0 0.0
      %643 = vmatprep.subr.mxu0 0.0
      %644 = vmatpush2.msra.mxu0 0.0
      %645 = vmatprep.subr.mxu0 0.0
      %646 = vmatpush2.msra.mxu0 0.0
      %647 = vmatprep.subr.mxu0 0.0
      %648 = vmatpush2.msra.mxu0 0.0
      %649 = vmatprep.subr.mxu0 0.0
      %650 = vmatpush2.msra.mxu0 0.0
      %651 = vmatprep.subr.mxu0 0.0
      %652 = vmatpush2.msra.mxu0 0.0
      %653 = vmatprep.subr.mxu0 0.0
      %654 = vmatpush2.msra.mxu0 0.0
      %655 = vmatprep.mubr.f32.mxu0 0.0
      %656 = vmatmul.mubr.f32.gmra.mxu0 %v580
      %v657 = vpop.f32.mrf.mxu0
      %v658 = vadd.f32 %v561, %v657
      %v659 = vpop.f32.mrf.mxu0
      %v660 = vadd.f32 %v561, %v659
      %661 = vmatprep.mubr.f32.mxu0 0.0
      %662 = vmatmul.mubr.f32.gmra.mxu0 %v583
      %v663 = vpop.f32.mrf.mxu0
      %v664 = vadd.f32 %v566, %v663
      %v665 = vpop.f32.mrf.mxu0
      %v666 = vadd.f32 %v566, %v665
      %667 = vmatprep.mubr.f32.mxu0 0.0
      %668 = vmatmul.mubr.f32.gmra.mxu0 %v586
      %v669 = vpop.f32.mrf.mxu0
      %v670 = vadd.f32 %v571, %v669
      %v671 = vpop.f32.mrf.mxu0
      %v672 = vadd.f32 %v571, %v671
      %673 = vmatprep.mubr.f32.mxu0 0.0
      %674 = vmatmul.mubr.f32.gmra.mxu0 %v589
      %v675 = vpop.f32.mrf.mxu0
      %v676 = vadd.f32 %v576, %v675
      %v677 = vpop.f32.mrf.mxu0
      %v678 = vadd.f32 %v576, %v677
      %679 = vdwg.mxu0
      %v680 = vsub.f32 0.0, %v658
      %v681 = vsub.f32 0.0, %v660
      %v682 = vsub.f32 0.0, %v664
      %v683 = vsub.f32 0.0, %v666
      %v684 = vsub.f32 0.0, %v670
      %v685 = vsub.f32 0.0, %v672
      %v686 = vsub.f32 0.0, %v676
      %v687 = vsub.f32 0.0, %v678
      %v688 = vmul.f32 %v680, 1.442695
      %v689 = vpow.pop %v688
      %v690 = vmul.f32 %v681, 1.442695
      %v691 = vpow.pop %v690
      %v692 = vmul.f32 %v682, 1.442695
      %v693 = vpow.pop %v692
      %v694 = vmul.f32 %v683, 1.442695
      %v695 = vpow.pop %v694
      %v696 = vmul.f32 %v684, 1.442695
      %v697 = vpow.pop %v696
      %v698 = vmul.f32 %v685, 1.442695
      %v699 = vpow.pop %v698
      %v700 = vmul.f32 %v686, 1.442695
      %v701 = vpow.pop %v700
      %v702 = vmul.f32 %v687, 1.442695
      %v703 = vpow.pop %v702
      %v704 = vadd.f32 %v689, 1.0
      %v705 = vadd.f32 %v691, 1.0
      %v706 = vadd.f32 %v693, 1.0
      %v707 = vadd.f32 %v695, 1.0
      %v708 = vadd.f32 %v697, 1.0
      %v709 = vadd.f32 %v699, 1.0
      %v710 = vadd.f32 %v701, 1.0
      %v711 = vadd.f32 %v703, 1.0
      %v712 = vrcp.pop %v704
      %v713 = vmul.f32 1.0, %v712
      %v714 = vrcp.pop %v705
      %v715 = vmul.f32 1.0, %v714
      %v716 = vrcp.pop %v706
      %v717 = vmul.f32 1.0, %v716
      %v718 = vrcp.pop %v707
      %v719 = vmul.f32 1.0, %v718
      %v720 = vrcp.pop %v708
      %v721 = vmul.f32 1.0, %v720
      %v722 = vrcp.pop %v709
      %v723 = vmul.f32 1.0, %v722
      %v724 = vrcp.pop %v710
      %v725 = vmul.f32 1.0, %v724
      %v726 = vrcp.pop %v711
      %v727 = vmul.f32 1.0, %v726
      %v728 = vmul.f32 %v658, %v713
      %v729 = vmul.f32 %v660, %v715
      %v730 = vmul.f32 %v664, %v717
      %v731 = vmul.f32 %v666, %v719
      %v732 = vmul.f32 %v670, %v721
      %v733 = vmul.f32 %v672, %v723
      %v734 = vmul.f32 %v676, %v725
      %v735 = vmul.f32 %v678, %v727
      %v736 = vld [vmem:[%s6] sm:$0xf]
      %v737 = vld [vmem:[%s7] sm:$0xf]
      %739 = vset.pattern.permute.xlu0 0
      %740 = vperm.xlu0 %739, %v737
      %v741 = vpop.permute.xlu0 %740
      %v744 = vsel %vm578, %v736, 0
      %746 = vmatprep.subr.mxu0 0.0
      %747 = vmatpush1.msra.mxu0 0.0
      %748 = vmatprep.subr.mxu0 0.0
      %749 = vmatpush1.msra.mxu0 0.0
      %750 = vmatprep.subr.mxu0 0.0
      %751 = vmatpush1.msra.mxu0 0.0
      %752 = vmatprep.subr.mxu0 0.0
      %753 = vmatpush1.msra.mxu0 0.0
      %754 = vmatprep.subr.mxu0 0.0
      %755 = vmatpush1.msra.mxu0 0.0
      %756 = vmatprep.subr.mxu0 0.0
      %757 = vmatpush1.msra.mxu0 0.0
      %758 = vmatprep.subr.mxu0 0.0
      %759 = vmatpush1.msra.mxu0 0.0
      %760 = vmatprep.subr.mxu0 0.0
      %761 = vmatpush1.msra.mxu0 0.0
      %762 = vmatprep.subr.mxu0 0.0
      %763 = vmatpush1.msra.mxu0 0.0
      %764 = vmatprep.subr.mxu0 0.0
      %765 = vmatpush1.msra.mxu0 0.0
      %766 = vmatprep.subr.mxu0 0.0
      %767 = vmatpush1.msra.mxu0 0.0
      %768 = vmatprep.subr.mxu0 0.0
      %769 = vmatpush1.msra.mxu0 0.0
      %770 = vmatprep.subr.mxu0 %v735
      %771 = vmatpush1.msra.mxu0 %v734
      %772 = vmatprep.subr.mxu0 %v733
      %773 = vmatpush1.msra.mxu0 %v732
      %774 = vmatprep.subr.mxu0 %v731
      %775 = vmatpush1.msra.mxu0 %v730
      %776 = vmatprep.subr.mxu0 %v729
      %777 = vmatpush1.msra.mxu0 %v728
      %778 = vmatprep.subr.mxu0 0.0
      %779 = vmatpush2.msra.mxu0 0.0
      %780 = vmatprep.subr.mxu0 0.0
      %781 = vmatpush2.msra.mxu0 0.0
      %782 = vmatprep.subr.mxu0 0.0
      %783 = vmatpush2.msra.mxu0 0.0
      %784 = vmatprep.subr.mxu0 0.0
      %785 = vmatpush2.msra.mxu0 0.0
      %786 = vmatprep.subr.mxu0 0.0
      %787 = vmatpush2.msra.mxu0 0.0
      %788 = vmatprep.subr.mxu0 0.0
      %789 = vmatpush2.msra.mxu0 0.0
      %790 = vmatprep.subr.mxu0 0.0
      %791 = vmatpush2.msra.mxu0 0.0
      %792 = vmatprep.subr.mxu0 0.0
      %793 = vmatpush2.msra.mxu0 0.0
      %794 = vmatprep.subr.mxu0 0.0
      %795 = vmatpush2.msra.mxu0 0.0
      %796 = vmatprep.subr.mxu0 0.0
      %797 = vmatpush2.msra.mxu0 0.0
      %798 = vmatprep.subr.mxu0 0.0
      %799 = vmatpush2.msra.mxu0 0.0
      %800 = vmatprep.subr.mxu0 0.0
      %801 = vmatpush2.msra.mxu0 0.0
      %802 = vmatprep.subr.mxu0 0.0
      %803 = vmatpush2.msra.mxu0 0.0
      %804 = vmatprep.subr.mxu0 0.0
      %805 = vmatpush2.msra.mxu0 0.0
      %806 = vmatprep.subr.mxu0 0.0
      %807 = vmatpush2.msra.mxu0 0.0
      %808 = vmatprep.subr.mxu0 0.0
      %809 = vmatpush2.msra.mxu0 0.0
      %810 = vmatprep.mubr.f32.mxu0 0.0
      %811 = vmatmul.mubr.f32.gmra.mxu0 %v744
      %v812 = vpop.f32.mrf.mxu0
      %v813 = vadd.f32 %v741, %v812
      %v814 = vpop.f32.mrf.mxu0
      %v815 = vadd.f32 %v741, %v814
      %816 = vdwg.mxu0
      %v819 = vrot.slane %v813, 4
      %v820 = vrot.slane %v815, 4
      %v823 = vsub.f32 %v339, %v819
      %v824 = vsub.f32 %v340, %v820
      %v825 = vmul.f32 %v823, %v823
      %v826 = vmul.f32 %v824, %v824
      %vm827 = vcmask 1047556
      %v828 = vsel %vm827, %v825, 0.0
      %v829 = vsel %vm827, %v826, 0.0
      %v830 = vadd.f32 %v828, %v829
      %831 = vadd.xlane.f32.xlu0 %v830
      %v832 = vpop.xlane.xlu0 %831
      %v834 = vrot.slane %v832, 4
      %v836 = vsel %vm398, %v834, 0.0
      %v837 = vrot.slane %v836, 4
      %v838 = vadd.f32 %v836, %v837
      %v839 = vrot.slane %v838, 2
      %v840 = vadd.f32 %v838, %v839
      %v841 = vrot.slane %v840, 1
      %v842 = vadd.f32 %v840, %v841
      %v843 = vmul.f32 %v842, 0.0009765625
      %vm844 = vcmask 0
      %845 = vst.msk [vmem:[%s338] sm:$0x1] %vm844, %v843
      %p846 = scmp.lt.s32.totalorder %s19, 1
      %s847 = scalar_select %p846, %s19, 1
      %s848 = scalar_lea.vmem %s8, %s847
      // Predicated region
      $region53: #{tpu_custom_call.1} parent=51 // pred_check
        %p849 = pneg %p220
      $region54: #{tpu_custom_call.1} parent=51 // pred_check_branch
        %851 = sbr.rel (%p849) target = $region56
      $region55: #{tpu_custom_call.1} parent=51 // pred_region
        _
      $region56: #{tpu_custom_call.1} parent=51 // pred_fallthru
        _
    $region52: #{tpu_custom_call.1} parent=5 // pred_fallthru
      _
    %p852 = scmp.le.s32.totalorder 2, %s14
    // Predicated region
    $region57: #{tpu_custom_call.1} parent=5 // pred_check
      %p853 = pneg %p852
    $region58: #{tpu_custom_call.1} parent=5 // pred_check_branch
      %855 = sbr.rel (%p853) target = $region60
    $region59: #{tpu_custom_call.1} parent=5 // pred_region
      %s856 = ssub.s32 %s14, 2
      // Predicated region
      $region61: #{tpu_custom_call.1} parent=59 // pred_check
        %p857 = pneg %p226
      $region62: #{tpu_custom_call.1} parent=59 // pred_check_branch
        %859 = sbr.rel (%p857) target = $region64
      $region63: #{tpu_custom_call.1} parent=59 // pred_region
        %p860 = scmp.lt.s32.totalorder %s20, 1
        %s861 = scalar_select %p860, %s20, 1
        %s862 = scalar_lea.vmem %s8, %s861
      $region64: #{tpu_custom_call.1} parent=59 // pred_fallthru
        _
    $region60: #{tpu_custom_call.1} parent=5 // pred_fallthru
      _
  $region6: #{tpu_custom_call.1} parent=0 // loop_footer
    %s18 = sadd.s32 1, %s14
  $region7: #{tpu_custom_call.1} parent=0 // loop_footer_branch
    %13 = sbr.rel target = $region3
  $region8: #{tpu_custom_call.1} parent=0 // loop_exit
    _

</llo_original>
